<compile_context>
chip_gen: v7x
topology: tpu7x:2x2x1
jax: 0.10.0
libtpu: 0.0.40
codegen_flags: <defaults>
</compile_context>

<pallas_src>
import functools

import jax
import jax.numpy as jnp
import numpy as np
from jax.experimental import pallas as pl
from jax.experimental.pallas import tpu as pltpu

EPS = 1e-6


def _round_up(v, m):
    return ((v + m - 1) // m) * m


def _tpu_vmem_capacity_bytes():
    try:
        info = pltpu.get_tpu_info()
        cap = getattr(info, "vmem_capacity_bytes", None)
        if cap:
            return int(cap)
    except Exception:
        pass
    return 64 * 1024 * 1024  # conservative default: v7x per-TensorCore VMEM


def _layer_norm(r, gamma, beta, *, approx_recip):
    """Annotated-transformer LayerNorm on f32 rows: a2*(r-mean)/(std+eps)+b2, unbiased std."""
    d = r.shape[-1]
    mean = jnp.mean(r, axis=-1, keepdims=True)
    cent = r - mean
    var = jnp.sum(cent * cent, axis=-1, keepdims=True) * (1.0 / max(d - 1, 1))
    denom = jnp.sqrt(var) + EPS                # eps outside sqrt, divide by (std + eps)
    if approx_recip:
        inv = pl.reciprocal(denom, approx=True)   # EUP slot; gated to bf16 inputs
    else:
        inv = 1.0 / denom
    return cent * inv * gamma + beta


def _fused_kernel(x_ref, w_ref, b_ref, g_ref, bb_ref, o_ref, *, approx_recip):
    """W fully resident (single-buffered): matmul + residual + LayerNorm in one pass."""
    x = x_ref[...]                                       # native dtype -> fast MXU path
    y = jnp.dot(x, w_ref[...], preferred_element_type=jnp.float32)
    # TODO(synk): training-mode dropout (pltpu.prng_seed + stateful_bernoulli);
    # eval-mode nn.Dropout is identity, which is what is implemented here.
    r = y + x.astype(jnp.float32) + b_ref[...].astype(jnp.float32)
    out = _layer_norm(r, g_ref[...].astype(jnp.float32),
                      bb_ref[...].astype(jnp.float32), approx_recip=approx_recip)
    o_ref[...] = out.astype(o_ref.dtype)


def _ktiled_kernel(x_ref, w_ref, b_ref, g_ref, bb_ref, o_ref, acc_ref, *,
                   block_k, approx_recip):
    """W streamed through VMEM in (block_k, D) slabs; f32 accumulator; LN epilogue.

    The residual x is NOT a separate input: each x K-tile is added into its
    matching accumulator columns, so x is read from HBM exactly once.
    """
    k = pl.program_id(1)

    @pl.when(k == 0)
    def _():
        acc_ref[...] = jnp.zeros_like(acc_ref)

    x = x_ref[...]
    acc_ref[...] += jnp.dot(x, w_ref[...], preferred_element_type=jnp.float32)
    col0 = pl.multiple_of(k * block_k, 128)              # lane-aligned column offset
    acc_ref[:, pl.ds(col0, block_k)] += x.astype(jnp.float32)

    @pl.when(k == pl.num_programs(1) - 1)
    def _():
        r = acc_ref[...] + b_ref[...].astype(jnp.float32)
        out = _layer_norm(r, g_ref[...].astype(jnp.float32),
                          bb_ref[...].astype(jnp.float32), approx_recip=approx_recip)
        o_ref[...] = out.astype(o_ref.dtype)


def sublayer_connection(x, w, b, gamma, beta, *, block_m=None, block_k=None):
    """out = LayerNorm(x + (x @ w + b)).  x: (M, D); w: (D, D); b, gamma, beta: (D,)."""
    M, D = x.shape
    assert w.shape == (D, D)

    it_x = x.dtype.itemsize
    it_w = w.dtype.itemsize
    it_o = it_x
    row_mult = 16 if it_x == 2 else 8                    # sublane packing for bf16

    # Generation-aware VMEM budget (v5e/v6e: 128 MiB, v7x: 64 MiB per TensorCore),
    # with ~25% headroom left for compiler-internal scratch.
    vmem_cap = int(_tpu_vmem_capacity_bytes() * 0.75)
    w_bytes = D * D * it_w
    w_resident_budget = vmem_cap // 2                    # W is single-buffered when resident

    if block_k is None:
        if D % 128 == 0 and w_bytes > w_resident_budget:
            block_k = 128
            for cand in (512, 256):                      # MXU-aligned slabs (256-wide MXU)
                if D % cand == 0:
                    block_k = cand
                    break
        else:
            if w_bytes > vmem_cap:
                # TODO(synk): pad D (with masked LayerNorm stats) so very large,
                # non-128-aligned W can be K-streamed instead of failing here.
                raise ValueError(
                    f"W of {w_bytes} bytes cannot stay resident in VMEM and D={D} "
                    "is not 128-aligned, so K-streaming is unsupported.")
            block_k = D                                   # W fits resident
    assert D % block_k == 0
    n_k = D // block_k
    streamed = n_k > 1

    def _vmem_estimate(bm):
        small = 6 * D * 4                                 # bias / gamma / beta (Buffered(1))
        if not streamed:
            return (w_bytes                               # resident W, single-buffered
                    + 2 * bm * D * it_x                   # x tiles (double-buffered)
                    + 2 * bm * D * it_o                   # out tiles (double-buffered)
                    + 3 * bm * D * 4                      # f32 matmul result + LN temporaries
                    + small)
        return (2 * bm * block_k * it_x                   # x K-tiles (double-buffered)
                + 2 * block_k * D * it_w                  # W K-slabs (double-buffered)
                + 2 * bm * D * it_o                       # out tiles (double-buffered)
                + bm * D * 4                              # f32 accumulator scratch
                + 2 * bm * D * 4                          # epilogue temporaries
                + small)

    if block_m is None:
        # Large m-tiles amortize per-grid-step overhead and (streamed path) cut
        # repeated W HBM reads; keep grid_m >= 2 when M allows for megacore sharding.
        block_m = min(512, _round_up(max((M + 1) // 2, 1), row_mult))
    block_m = max(row_mult, _round_up(block_m, row_mult))
    while block_m > row_mult and _vmem_estimate(block_m) > vmem_cap:
        block_m = max(row_mult, _round_up(block_m // 2, row_mult))

    grid_m = pl.cdiv(M, block_m)        # partial last tile is fine: LayerNorm is row-wise

    # TPU prefers >= 2D operands; lift vectors to (1, D).
    b2 = b.reshape(1, D)
    g2 = gamma.reshape(1, D)
    bb2 = beta.reshape(1, D)

    vmem_limit = int(min(max(int(1.25 * _vmem_estimate(block_m)), 32 * 1024 * 1024),
                         vmem_cap))
    approx_recip = bool(x.dtype == jnp.bfloat16)          # exact divide on the f32 path

    out_shape = jax.ShapeDtypeStruct((M, D), x.dtype)

    if not streamed:
        kernel = functools.partial(_fused_kernel, approx_recip=approx_recip)
        return pl.pallas_call(
            kernel,
            out_shape=out_shape,
            grid_spec=pltpu.PrefetchScalarGridSpec(
                num_scalar_prefetch=0,
                grid=(grid_m,),
                in_specs=[
                    pl.BlockSpec((block_m, D), lambda i: (i, 0)),             # x tile
                    pl.BlockSpec((D, D), lambda i: (0, 0),
                                 pipeline_mode=pl.Buffered(1)),               # W (resident, 1x)
                    pl.BlockSpec((1, D), lambda i: (0, 0),
                                 pipeline_mode=pl.Buffered(1)),               # bias
                    pl.BlockSpec((1, D), lambda i: (0, 0),
                                 pipeline_mode=pl.Buffered(1)),               # gamma (a_2)
                    pl.BlockSpec((1, D), lambda i: (0, 0),
                                 pipeline_mode=pl.Buffered(1)),               # beta  (b_2)
                ],
                out_specs=pl.BlockSpec((block_m, D), lambda i: (i, 0)),
            ),
            compiler_params=pltpu.CompilerParams(
                dimension_semantics=("parallel",),
                vmem_limit_bytes=vmem_limit),
        )(x, w, b2, g2, bb2)

    kernel = functools.partial(_ktiled_kernel, block_k=block_k,
                               approx_recip=approx_recip)
    return pl.pallas_call(
        kernel,
        out_shape=out_shape,
        grid_spec=pltpu.PrefetchScalarGridSpec(
            num_scalar_prefetch=0,
            grid=(grid_m, n_k),
            in_specs=[
                pl.BlockSpec((block_m, block_k), lambda i, k: (i, k)),        # x K-tile
                pl.BlockSpec((block_k, D), lambda i, k: (k, 0)),              # W K-slab (streamed)
                pl.BlockSpec((1, D), lambda i, k: (0, 0),
                             pipeline_mode=pl.Buffered(1)),                   # bias
                pl.BlockSpec((1, D), lambda i, k: (0, 0),
                             pipeline_mode=pl.Buffered(1)),                   # gamma
                pl.BlockSpec((1, D), lambda i, k: (0, 0),
                             pipeline_mode=pl.Buffered(1)),                   # beta
            ],
            out_specs=pl.BlockSpec((block_m, D), lambda i, k: (i, 0)),
            scratch_shapes=[pltpu.VMEM((block_m, D), jnp.float32)],
        ),
        compiler_params=pltpu.CompilerParams(
            dimension_semantics=("parallel", "arbitrary"),
            vmem_limit_bytes=vmem_limit),
    )(x, w, b2, g2, bb2)


def reference(x, w, b, gamma, beta):
    xf = x.astype(jnp.float32)
    y = xf @ w.astype(jnp.float32) + b.astype(jnp.float32)
    r = xf + y
    d = r.shape[-1]
    mean = jnp.mean(r, axis=-1, keepdims=True)
    var = jnp.sum((r - mean) ** 2, axis=-1, keepdims=True) / max(d - 1, 1)
    out = ((r - mean) / (jnp.sqrt(var) + EPS) * gamma.astype(jnp.float32)
           + beta.astype(jnp.float32))
    return out.astype(x.dtype)


if __name__ == "__main__":
    key = jax.random.PRNGKey(0)
    kx, kw, kb, kg, kbt, kx2, kw2 = jax.random.split(key, 7)

    # --- test 1: small module-sized shapes (batch=2, seq=8, hidden=32), f32 ----
    batch, seq, hidden = 2, 8, 32
    x3 = jax.random.normal(kx, (batch, seq, hidden), dtype=jnp.float32)
    w = jax.random.normal(kw, (hidden, hidden), dtype=jnp.float32) * 0.05
    b = jax.random.normal(kb, (hidden,), dtype=jnp.float32) * 0.01
    gamma = 1.0 + 0.1 * jax.random.normal(kg, (hidden,), dtype=jnp.float32)   # a_2
    beta = 0.1 * jax.random.normal(kbt, (hidden,), dtype=jnp.float32)         # b_2

    x = x3.reshape(batch * seq, hidden)                 # (M, D): D on the lane axis
    out = jax.block_until_ready(sublayer_connection(x, w, b, gamma, beta))
    ref = jax.block_until_ready(reference(x, w, b, gamma, beta))
    np.testing.assert_allclose(np.asarray(out), np.asarray(ref), rtol=1e-4, atol=1e-4)

    # --- test 2: bf16 fast path, D=128 lane-dense, ragged M (partial last tile) -
    M1, D1 = 100, 128
    x1 = jax.random.normal(kx2, (M1, D1), dtype=jnp.float32)
    w1 = jax.random.normal(kw2, (D1, D1), dtype=jnp.float32) * 0.05
    b1 = jax.random.normal(kb, (D1,), dtype=jnp.float32) * 0.01
    g1 = 1.0 + 0.1 * jax.random.normal(kg, (D1,), dtype=jnp.float32)
    t1 = 0.1 * jax.random.normal(kbt, (D1,), dtype=jnp.float32)
    xb, wb = x1.astype(jnp.bfloat16), w1.astype(jnp.bfloat16)
    bb_, gb, tb = (b1.astype(jnp.bfloat16), g1.astype(jnp.bfloat16),
                   t1.astype(jnp.bfloat16))
    out_bf = jax.block_until_ready(sublayer_connection(xb, wb, bb_, gb, tb))
    ref_bf = jax.block_until_ready(reference(xb, wb, bb_, gb, tb))
    np.testing.assert_allclose(np.asarray(out_bf.astype(jnp.float32)),
                               np.asarray(ref_bf.astype(jnp.float32)),
                               rtol=5e-2, atol=5e-2)

    # --- test 3: K-tiled path (W streamed), forced block_k < D, ragged M -------
    M2, D2 = 100, 256
    x2 = jax.random.normal(kx2, (M2, D2), dtype=jnp.float32)
    w2 = jax.random.normal(kw2, (D2, D2), dtype=jnp.float32) * 0.05
    b2v = jnp.zeros((D2,), dtype=jnp.float32)
    g2v = jnp.ones((D2,), dtype=jnp.float32)
    t2v = jnp.zeros((D2,), dtype=jnp.float32)
    out2 = jax.block_until_ready(
        sublayer_connection(x2, w2, b2v, g2v, t2v, block_k=128))
    ref2 = jax.block_until_ready(reference(x2, w2, b2v, g2v, t2v))
    np.testing.assert_allclose(np.asarray(out2), np.asarray(ref2), rtol=1e-4, atol=1e-4)

    print("KERNEL_OK")
</pallas_src>

<mosaic_0001>
module attributes {stable_mosaic.version = 11 : i64} {
  func.func @_fused_kernel(%arg0: i32, %arg1: memref<8x32xf32, #tpu.memory_space<vmem>>, %arg2: memref<32x32xf32, #tpu.memory_space<vmem>>, %arg3: memref<1x32xf32, #tpu.memory_space<vmem>>, %arg4: memref<1x32xf32, #tpu.memory_space<vmem>>, %arg5: memref<1x32xf32, #tpu.memory_space<vmem>>, %arg6: memref<8x32xf32, #tpu.memory_space<vmem>>) attributes {dimension_semantics = [#tpu.dimension_semantics<parallel>], iteration_bounds = array<i64: 2>, scalar_prefetch = 0 : i64, scratch_operands = 0 : i64, tpu.core_type = #tpu.core_type<tc>, window_params = [{transform_indices = @transform_0, window_bounds = array<i64: 8, 32>}, {pipeline_mode = #tpu.pipeline_mode<synchronous>, transform_indices = @transform_1, window_bounds = array<i64: 32, 32>}, {pipeline_mode = #tpu.pipeline_mode<synchronous>, transform_indices = @transform_2, window_bounds = array<i64: 1, 32>}, {pipeline_mode = #tpu.pipeline_mode<synchronous>, transform_indices = @transform_3, window_bounds = array<i64: 1, 32>}, {pipeline_mode = #tpu.pipeline_mode<synchronous>, transform_indices = @transform_4, window_bounds = array<i64: 1, 32>}, {transform_indices = @transform_5, window_bounds = array<i64: 8, 32>}]} {
    %c0 = arith.constant 0 : index
    %c0_0 = arith.constant 0 : index
    %0 = vector.load %arg1[%c0, %c0_0] : memref<8x32xf32, #tpu.memory_space<vmem>>, vector<8x32xf32>
    %c0_1 = arith.constant 0 : index
    %c0_2 = arith.constant 0 : index
    %1 = vector.load %arg2[%c0_1, %c0_2] : memref<32x32xf32, #tpu.memory_space<vmem>>, vector<32x32xf32>
    %cst = arith.constant dense<0.000000e+00> : vector<8x32xf32>
    %2 = tpu.matmul %0, %1, %cst {dimension_numbers = #tpu.dot_dimension_numbers<[1], [0], [0], [1], [0, 0, 1, 1], [], []>} : vector<8x32xf32>, vector<32x32xf32>, vector<8x32xf32> -> vector<8x32xf32>
    %3 = arith.addf %2, %0 : vector<8x32xf32>
    %c0_3 = arith.constant 0 : index
    %c0_4 = arith.constant 0 : index
    %4 = vector.load %arg3[%c0_3, %c0_4] : memref<1x32xf32, #tpu.memory_space<vmem>>, vector<1x32xf32>
    %5 = vector.broadcast %4 : vector<1x32xf32> to vector<8x32xf32>
    %6 = arith.addf %3, %5 : vector<8x32xf32>
    %c0_5 = arith.constant 0 : index
    %c0_6 = arith.constant 0 : index
    %7 = vector.load %arg4[%c0_5, %c0_6] : memref<1x32xf32, #tpu.memory_space<vmem>>, vector<1x32xf32>
    %c0_7 = arith.constant 0 : index
    %c0_8 = arith.constant 0 : index
    %8 = vector.load %arg5[%c0_7, %c0_8] : memref<1x32xf32, #tpu.memory_space<vmem>>, vector<1x32xf32>
    %cst_9 = arith.constant dense<0.000000e+00> : vector<8xf32>
    %9 = vector.multi_reduction <add>, %6, %cst_9 [1] : vector<8x32xf32> to vector<8xf32>
    %10 = vector.shape_cast %9 : vector<8xf32> to vector<8x1xf32>
    %cst_10 = arith.constant 3.200000e+01 : f32
    %11 = vector.broadcast %cst_10 : f32 to vector<8x1xf32>
    %12 = arith.divf %10, %11 : vector<8x1xf32>
    %13 = vector.broadcast %12 : vector<8x1xf32> to vector<8x32xf32>
    %14 = arith.subf %6, %13 : vector<8x32xf32>
    %15 = arith.mulf %14, %14 : vector<8x32xf32>
    %cst_11 = arith.constant dense<0.000000e+00> : vector<8xf32>
    %16 = vector.multi_reduction <add>, %15, %cst_11 [1] : vector<8x32xf32> to vector<8xf32>
    %17 = vector.shape_cast %16 : vector<8xf32> to vector<8x1xf32>
    %cst_12 = arith.constant 0.0322580636 : f32
    %18 = vector.broadcast %cst_12 : f32 to vector<8x1xf32>
    %19 = arith.mulf %17, %18 : vector<8x1xf32>
    %20 = math.sqrt %19 : vector<8x1xf32>
    %cst_13 = arith.constant 9.99999997E-7 : f32
    %21 = vector.broadcast %cst_13 : f32 to vector<8x1xf32>
    %22 = arith.addf %20, %21 : vector<8x1xf32>
    %cst_14 = arith.constant 1.000000e+00 : f32
    %23 = vector.broadcast %cst_14 : f32 to vector<8x1xf32>
    %24 = arith.divf %23, %22 : vector<8x1xf32>
    %25 = vector.broadcast %24 : vector<8x1xf32> to vector<8x32xf32>
    %26 = arith.mulf %14, %25 : vector<8x32xf32>
    %27 = vector.broadcast %7 : vector<1x32xf32> to vector<8x32xf32>
    %28 = arith.mulf %26, %27 : vector<8x32xf32>
    %29 = vector.broadcast %8 : vector<1x32xf32> to vector<8x32xf32>
    %30 = arith.addf %28, %29 : vector<8x32xf32>
    %c0_15 = arith.constant 0 : index
    %c0_16 = arith.constant 0 : index
    %31 = vector.load %arg6[%c0_15, %c0_16] : memref<8x32xf32, #tpu.memory_space<vmem>>, vector<8x32xf32>
    tpu.vector_store %arg6[%c0_15, %c0_16], %30 {strides = array<i32>} : memref<8x32xf32, #tpu.memory_space<vmem>>, vector<8x32xf32>,
    return
  }
  func.func @transform_0(%arg0: i32) -> (i32, i32) {
    %c0_i32 = arith.constant 0 : i32
    %c0_i32_0 = arith.constant 0 : i32
    return %arg0, %c0_i32 : i32, i32
  }
  func.func @transform_1(%arg0: i32) -> (i32, i32) {
    %c0_i32 = arith.constant 0 : i32
    %c0_i32_0 = arith.constant 0 : i32
    %c0_i32_1 = arith.constant 0 : i32
    return %c0_i32, %c0_i32_0 : i32, i32
  }
  func.func @transform_2(%arg0: i32) -> (i32, i32) {
    %c0_i32 = arith.constant 0 : i32
    %c0_i32_0 = arith.constant 0 : i32
    %c0_i32_1 = arith.constant 0 : i32
    return %c0_i32, %c0_i32_0 : i32, i32
  }
  func.func @transform_3(%arg0: i32) -> (i32, i32) {
    %c0_i32 = arith.constant 0 : i32
    %c0_i32_0 = arith.constant 0 : i32
    %c0_i32_1 = arith.constant 0 : i32
    return %c0_i32, %c0_i32_0 : i32, i32
  }
  func.func @transform_4(%arg0: i32) -> (i32, i32) {
    %c0_i32 = arith.constant 0 : i32
    %c0_i32_0 = arith.constant 0 : i32
    %c0_i32_1 = arith.constant 0 : i32
    return %c0_i32, %c0_i32_0 : i32, i32
  }
  func.func @transform_5(%arg0: i32) -> (i32, i32) {
    %c0_i32 = arith.constant 0 : i32
    %c0_i32_0 = arith.constant 0 : i32
    return %arg0, %c0_i32 : i32, i32
  }
}

</mosaic_0001>

<llo_original>
// kernel: tpu_custom_call.1
$region0: #{tpu_custom_call.1}
  #allocation0 [shape = 'u32[]', space=smem, size = 0x4, offset = 0x4, fixed_abs, tag = 'smem constant byte address 0x4 - core index']
  #allocation1 [shape = 'u32[144,128]{1,0:T(1,128)}', space=vmem, size = 0x12000, scoped, tag = 'internal scratch']
  %s0 = inlined_call_operand.hbm [shape: f32[16,32], index: 0, kind: input, shape index: {}]
  %s1 = inlined_call_operand.hbm [shape: f32[32,32], index: 1, kind: input, shape index: {}]
  %s2 = inlined_call_operand.vmem [shape: f32[1,32], index: 2, kind: input, shape index: {}]
  %s3 = inlined_call_operand.vmem [shape: f32[1,32], index: 3, kind: input, shape index: {}]
  %s4 = inlined_call_operand.vmem [shape: f32[1,32], index: 4, kind: input, shape index: {}]
  %s5 = inlined_call_operand.hbm [shape: f32[16,32], index: 5, kind: output, shape index: {}]
  %s6 = sld [smem:[#allocation0]]
  $region61: #{tpu_custom_call.1} parent=0
    _
  %s8 = ssub.s32 1, %s6
  %s9 = scalar_select 0, %s8, %s6
  $region1: #{tpu_custom_call.1} parent=0
    #allocation2 [shape = 'u8[8192]{0}', space=vmem, size = 0x2000, scoped, tag = 'input window, operand 0']
    #allocation3 [shape = 's32[2]{0}', space=sflag, size = 0x8, scoped, tag = 'scoped memory for tpu_custom_call.1']
    #allocation4 [shape = 's32[2]{0}', space=sflag, size = 0x8, scoped, tag = 'scoped memory for tpu_custom_call.1']
    #allocation5 [shape = 'u8[16384]{0}', space=vmem, size = 0x4000, scoped, tag = 'input window, operand 1, single buffered']
    #allocation6 [shape = 's32[1]{0}', space=sflag, size = 0x4, scoped, tag = 'scoped memory for tpu_custom_call.1']
    #allocation7 [shape = 'u8[8192]{0}', space=vmem, size = 0x2000, scoped, tag = 'output window, operand 0']
    %10 = vsyncpa [#allocation3], 0
    %s11 = scalar_lea.sflag [#allocation3], 1
    %12 = vsyncpa %s11, 0
    %13 = vsyncpa [#allocation6], 0
    %14 = vsyncpa [#allocation4], 0
    %s15 = scalar_lea.sflag [#allocation4], 1
    %16 = vsyncpa %s15, 0
    loop: start=0, step=1, limit=4
    $region2: #{tpu_custom_call.1} parent=1 // loop_pre_header
      _
    $region3: #{tpu_custom_call.1} parent=1 // loop_header
      %s18 = sphi 0, %s22
      %p19 = scmp.ge.s32.totalorder %s18, 4
      %s28 = sphi 0, %s30
      %s31 = sphi 0, %s28
      %s32 = sphi 0, %s31
      %s48 = sphi 0, %s32
      %s52 = sphi 0, %s52
      %s54 = sphi 0, %s52
      %s55 = sphi 0, %s54
      %s69 = sphi 0, %s55
      %s73 = sphi 0, %s73
      %s75 = sphi 0, %s73
      %s76 = sphi 0, %s75
      %s90 = sphi 0, %s76
      %s94 = sphi 0, %s94
      %s96 = sphi 0, %s94
      %s97 = sphi 0, %s96
      %s111 = sphi 0, %s97
      %s115 = sphi 0, %s115
      %s117 = sphi 0, %s115
      %s118 = sphi 0, %s117
      %s132 = sphi 0, %s118
      %s138 = sphi 0, %s140
      %s141 = sphi 0, %s138
      %s142 = sphi 0, %s141
      %s158 = sphi 0, %s142
    $region4: #{tpu_custom_call.1} parent=1 // loop_header_branch
      %21 = sbr.rel (%p19) target = $region8
    $region5: #{tpu_custom_call.1} parent=1 // loop_body
      %s23 = ssub.s32 %s18, 1
      %s24 = ssub.s32 %s18, 2
      %s25 = sadd.s32 %s18, 1
      %s26 = ssub.s32 %s18, %s25
      %p27 = scmp.eq.s32.totalorder %s26, 0
      %s29 = sadd.s32 %s28, 1
      %s30 = scalar_select %p27, %s28, %s29
      %p33 = pneg %p27
      %p34 = scmp.eq.s32.totalorder %s18, 1
      %p35 = por %p33, %p34
      %p36 = scmp.ne.s32.totalorder %s28, %s31
      %p37 = scmp.eq.s32.totalorder %s18, 0
      %p38 = por %p36, %p37
      %p39 = scmp.ne.s32.totalorder %s28, %s31
      %p40 = scmp.eq.s32.totalorder %s23, 1
      %p41 = por %p39, %p40
      %p42 = scmp.ne.s32.totalorder %s31, %s32
      %p43 = scmp.eq.s32.totalorder %s23, 0
      %p44 = por %p42, %p43
      %p45 = scmp.ne.s32.totalorder %s31, %s32
      %p46 = scmp.eq.s32.totalorder %s24, 1
      %p47 = por %p45, %p46
      %p49 = scmp.ne.s32.totalorder %s32, %s48
      %p50 = scmp.eq.s32.totalorder %s24, 0
      %p51 = por %p49, %p50
      %s53 = sadd.s32 %s52, 1
      %p56 = scmp.eq.s32.totalorder %s18, 1
      %p57 = scmp.ne.s32.totalorder %s52, %s54
      %p58 = scmp.eq.s32.totalorder %s18, 0
      %p59 = por %p57, %p58
      %p60 = scmp.ne.s32.totalorder %s52, %s54
      %p61 = scmp.eq.s32.totalorder %s23, 1
      %p62 = por %p60, %p61
      %p63 = scmp.ne.s32.totalorder %s54, %s55
      %p64 = scmp.eq.s32.totalorder %s23, 0
      %p65 = por %p63, %p64
      %p66 = scmp.ne.s32.totalorder %s54, %s55
      %p67 = scmp.eq.s32.totalorder %s24, 1
      %p68 = por %p66, %p67
      %p70 = scmp.ne.s32.totalorder %s55, %s69
      %p71 = scmp.eq.s32.totalorder %s24, 0
      %p72 = por %p70, %p71
      %s74 = sadd.s32 %s73, 1
      %p77 = scmp.eq.s32.totalorder %s18, 1
      %p78 = scmp.ne.s32.totalorder %s73, %s75
      %p79 = scmp.eq.s32.totalorder %s18, 0
      %p80 = por %p78, %p79
      %p81 = scmp.ne.s32.totalorder %s73, %s75
      %p82 = scmp.eq.s32.totalorder %s23, 1
      %p83 = por %p81, %p82
      %p84 = scmp.ne.s32.totalorder %s75, %s76
      %p85 = scmp.eq.s32.totalorder %s23, 0
      %p86 = por %p84, %p85
      %p87 = scmp.ne.s32.totalorder %s75, %s76
      %p88 = scmp.eq.s32.totalorder %s24, 1
      %p89 = por %p87, %p88
      %p91 = scmp.ne.s32.totalorder %s76, %s90
      %p92 = scmp.eq.s32.totalorder %s24, 0
      %p93 = por %p91, %p92
      %s95 = sadd.s32 %s94, 1
      %p98 = scmp.eq.s32.totalorder %s18, 1
      %p99 = scmp.ne.s32.totalorder %s94, %s96
      %p100 = scmp.eq.s32.totalorder %s18, 0
      %p101 = por %p99, %p100
      %p102 = scmp.ne.s32.totalorder %s94, %s96
      %p103 = scmp.eq.s32.totalorder %s23, 1
      %p104 = por %p102, %p103
      %p105 = scmp.ne.s32.totalorder %s96, %s97
      %p106 = scmp.eq.s32.totalorder %s23, 0
      %p107 = por %p105, %p106
      %p108 = scmp.ne.s32.totalorder %s96, %s97
      %p109 = scmp.eq.s32.totalorder %s24, 1
      %p110 = por %p108, %p109
      %p112 = scmp.ne.s32.totalorder %s97, %s111
      %p113 = scmp.eq.s32.totalorder %s24, 0
      %p114 = por %p112, %p113
      %s116 = sadd.s32 %s115, 1
      %p119 = scmp.eq.s32.totalorder %s18, 1
      %p120 = scmp.ne.s32.totalorder %s115, %s117
      %p121 = scmp.eq.s32.totalorder %s18, 0
      %p122 = por %p120, %p121
      %p123 = scmp.ne.s32.totalorder %s115, %s117
      %p124 = scmp.eq.s32.totalorder %s23, 1
      %p125 = por %p123, %p124
      %p126 = scmp.ne.s32.totalorder %s117, %s118
      %p127 = scmp.eq.s32.totalorder %s23, 0
      %p128 = por %p126, %p127
      %p129 = scmp.ne.s32.totalorder %s117, %s118
      %p130 = scmp.eq.s32.totalorder %s24, 1
      %p131 = por %p129, %p130
      %p133 = scmp.ne.s32.totalorder %s118, %s132
      %p134 = scmp.eq.s32.totalorder %s24, 0
      %p135 = por %p133, %p134
      %s136 = ssub.s32 %s18, %s25
      %p137 = scmp.eq.s32.totalorder %s136, 0
      %s139 = sadd.s32 %s138, 1
      %s140 = scalar_select %p137, %s138, %s139
      %p143 = pneg %p137
      %p144 = scmp.eq.s32.totalorder %s18, 1
      %p145 = por %p143, %p144
      %p146 = scmp.ne.s32.totalorder %s138, %s141
      %p147 = scmp.eq.s32.totalorder %s18, 0
      %p148 = por %p146, %p147
      %p149 = scmp.ne.s32.totalorder %s138, %s141
      %p150 = scmp.eq.s32.totalorder %s23, 1
      %p151 = por %p149, %p150
      %p152 = scmp.ne.s32.totalorder %s141, %s142
      %p153 = scmp.eq.s32.totalorder %s23, 0
      %p154 = por %p152, %p153
      %p155 = scmp.ne.s32.totalorder %s141, %s142
      %p156 = scmp.eq.s32.totalorder %s24, 1
      %p157 = por %p155, %p156
      %p159 = scmp.ne.s32.totalorder %s142, %s158
      %p160 = scmp.eq.s32.totalorder %s24, 0
      %p161 = por %p159, %p160
      %p162 = scmp.le.s32.totalorder 1, %s18
      %p163 = scmp.lt.s32.totalorder %s18, 3
      %p164 = pnand %p162, %p163
      %p165 = pneg %p164
      // Predicated region
      $region9: #{tpu_custom_call.1} parent=5 // pred_check
        _
      $region10: #{tpu_custom_call.1} parent=5 // pred_check_branch
        %167 = sbr.rel (%p164) target = $region12
      $region11: #{tpu_custom_call.1} parent=5 // pred_region
        %s168 = ssub.s32 %s18, 1
        // Predicated region
        $region13: #{tpu_custom_call.1} parent=11 // pred_check
          %p169 = pneg %p65
        $region14: #{tpu_custom_call.1} parent=11 // pred_check_branch
          %171 = sbr.rel (%p169) target = $region16
        $region15: #{tpu_custom_call.1} parent=11 // pred_region
          %s173 = ssub.s32 512, 512
          %174 = vsyncadd [#allocation6], %s173
          %s175 = sshll.u32 [#allocation5], 4
          %s176 = int_to_ptr.vmem [resolvable:$true] %s175
          %181 = dma.hbm_to_vmem [thread:$0]  %s1, 512, %s176, [#allocation6], 128, 128, 8
        $region16: #{tpu_custom_call.1} parent=11 // pred_fallthru
          _
        // Predicated region
        $region17: #{tpu_custom_call.1} parent=11 // pred_check
          %p182 = pneg %p86
        $region18: #{tpu_custom_call.1} parent=11 // pred_check_branch
          %184 = sbr.rel (%p182) target = $region20
        $region19: #{tpu_custom_call.1} parent=11 // pred_region
          _
        $region20: #{tpu_custom_call.1} parent=11 // pred_fallthru
          _
        // Predicated region
        $region21: #{tpu_custom_call.1} parent=11 // pred_check
          %p185 = pneg %p107
        $region22: #{tpu_custom_call.1} parent=11 // pred_check_branch
          %187 = sbr.rel (%p185) target = $region24
        $region23: #{tpu_custom_call.1} parent=11 // pred_region
          _
        $region24: #{tpu_custom_call.1} parent=11 // pred_fallthru
          _
        // Predicated region
        $region25: #{tpu_custom_call.1} parent=11 // pred_check
          %p188 = pneg %p128
        $region26: #{tpu_custom_call.1} parent=11 // pred_check_branch
          %190 = sbr.rel (%p188) target = $region28
        $region27: #{tpu_custom_call.1} parent=11 // pred_region
          _
        $region28: #{tpu_custom_call.1} parent=11 // pred_fallthru
          _
      $region12: #{tpu_custom_call.1} parent=5 // pred_fallthru
        _
      %p191 = scmp.lt.s32.totalorder %s18, 2
      // Predicated region
      $region29: #{tpu_custom_call.1} parent=5 // pred_check
        %p192 = pneg %p191
      $region30: #{tpu_custom_call.1} parent=5 // pred_check_branch
        %194 = sbr.rel (%p192) target = $region32
      $region31: #{tpu_custom_call.1} parent=5 // pred_region
        // Predicated region
        $region33: #{tpu_custom_call.1} parent=31 // pred_check
          %p195 = pneg %p38
        $region34: #{tpu_custom_call.1} parent=31 // pred_check_branch
          %197 = sbr.rel (%p195) target = $region36
        $region35: #{tpu_custom_call.1} parent=31 // pred_region
          %s198 = sand.u32 %s28, 1
          %s199 = scalar_lea.sflag [#allocation3], %s198
          %s200 = sand.u32 %s28, 1
          %s201 = smul.addr %s200, 8
          %s202 = scalar_lea.vmem [#allocation2], %s201
          %s204 = ssub.s32 128, 128
          %205 = vsyncadd %s199, %s204
          %s206 = smul.addr %s18, 128
          %s207 = scalar_lea.hbm %s0, %s206
          %s209 = sshll.u32 %s202, 4
          %s210 = int_to_ptr.vmem [resolvable:$true] %s209
          %212 = dma.hbm_to_vmem [thread:$0]  %s207, 128, %s210, %s199
        $region36: #{tpu_custom_call.1} parent=31 // pred_fallthru
          _
      $region32: #{tpu_custom_call.1} parent=5 // pred_fallthru
        _
      %p213 = scmp.le.s32.totalorder 1, %s18
      %p214 = scmp.lt.s32.totalorder %s18, 3
      %p215 = pnand %p213, %p214
      %p216 = pneg %p215
      // Predicated region
      $region37: #{tpu_custom_call.1} parent=5 // pred_check
        _
      $region38: #{tpu_custom_call.1} parent=5 // pred_check_branch
        %218 = sbr.rel (%p215) target = $region40
      $region39: #{tpu_custom_call.1} parent=5 // pred_region
        %s219 = ssub.s32 %s18, 1
        %s220 = sand.u32 %s31, 1
        %s221 = scalar_lea.sflag [#allocation3], %s220
        %s222 = sand.u32 %s31, 1
        %s223 = smul.addr %s222, 8
        %s224 = scalar_lea.vmem [#allocation2], %s223
        // Predicated region
        $region41: #{tpu_custom_call.1} parent=39 // pred_check
          %p225 = pneg %p44
        $region42: #{tpu_custom_call.1} parent=39 // pred_check_branch
          %227 = sbr.rel (%p225) target = $region44
        $region43: #{tpu_custom_call.1} parent=39 // pred_region
          %228 = dma.done %s221, 128
        $region44: #{tpu_custom_call.1} parent=39 // pred_fallthru
          _
        // Predicated region
        $region45: #{tpu_custom_call.1} parent=39 // pred_check
          %p229 = pneg %p65
        $region46: #{tpu_custom_call.1} parent=39 // pred_check_branch
          %231 = sbr.rel (%p229) target = $region48
        $region47: #{tpu_custom_call.1} parent=39 // pred_region
          %232 = dma.done [#allocation6], 512
        $region48: #{tpu_custom_call.1} parent=39 // pred_fallthru
          _
        %s233 = sand.u32 %s31, 1
        %s234 = scalar_lea.sflag [#allocation3], %s233
        %s235 = sand.u32 %s31, 1
        %s236 = smul.addr %s235, 8
        %s237 = scalar_lea.vmem [#allocation2], %s236
        %p238 = pneg %p44
        %p239 = pneg %p41
        %p240 = pneg %p65
        %p241 = pneg %p62
        %p242 = pneg %p86
        %p243 = pneg %p83
        %p244 = pneg %p107
        %p245 = pneg %p104
        %p246 = pneg %p128
        %p247 = pneg %p125
        %p248 = pneg %p154
        %p249 = pneg %p151
        %s250 = sand.u32 %s141, 1
        %s251 = scalar_lea.sflag [#allocation4], %s250
        %s252 = sand.u32 %s141, 1
        %s253 = smul.addr %s252, 8
        %s254 = scalar_lea.vmem [#allocation7], %s253
        %v255 = vld [vmem:[%s224] sm:$0xff]
        %v256 = vld [vmem:[#allocation5] sm:$0xff]
        %v257 = vld [vmem:[#allocation5 + $0x8] sm:$0xff]
        %v258 = vld [vmem:[#allocation5 + $0x10] sm:$0xff]
        %v259 = vld [vmem:[#allocation5 + $0x18] sm:$0xff]
        %vm260 = vcmask 261120
        %v262 = vsel %vm260, %v255, 0
        %264 = vmatprep.subr.mxu0 0.0
        %265 = vmatpush1.msra.mxu0 %v256
        %266 = vmatprep.subr.mxu0 0.0
        %267 = vmatpush1.msra.mxu0 %v257
        %268 = vmatprep.subr.mxu0 0.0
        %269 = vmatpush1.msra.mxu0 %v258
        %270 = vmatprep.subr.mxu0 0.0
        %271 = vmatpush1.msra.mxu0 %v259
        %272 = vmatprep.subr.mxu0 0.0
        %273 = vmatpush1.msra.mxu0 0.0
        %274 = vmatprep.subr.mxu0 0.0
        %275 = vmatpush1.msra.mxu0 0.0
        %276 = vmatprep.subr.mxu0 0.0
        %277 = vmatpush1.msra.mxu0 0.0
        %278 = vmatprep.subr.mxu0 0.0
        %279 = vmatpush1.msra.mxu0 0.0
        %280 = vmatprep.subr.mxu0 0.0
        %281 = vmatpush1.msra.mxu0 0.0
        %282 = vmatprep.subr.mxu0 0.0
        %283 = vmatpush1.msra.mxu0 0.0
        %284 = vmatprep.subr.mxu0 0.0
        %285 = vmatpush1.msra.mxu0 0.0
        %286 = vmatprep.subr.mxu0 0.0
        %287 = vmatpush1.msra.mxu0 0.0
        %288 = vmatprep.subr.mxu0 0.0
        %289 = vmatpush1.msra.mxu0 0.0
        %290 = vmatprep.subr.mxu0 0.0
        %291 = vmatpush1.msra.mxu0 0.0
        %292 = vmatprep.subr.mxu0 0.0
        %293 = vmatpush1.msra.mxu0 0.0
        %294 = vmatprep.subr.mxu0 0.0
        %295 = vmatpush1.msra.mxu0 0.0
        %296 = vmatprep.subr.mxu0 0.0
        %297 = vmatpush1.msra.mxu0 0.0
        %298 = vmatprep.subr.mxu0 0.0
        %299 = vmatpush1.msra.mxu0 0.0
        %300 = vmatprep.subr.mxu0 0.0
        %301 = vmatpush1.msra.mxu0 0.0
        %302 = vmatprep.subr.mxu0 0.0
        %303 = vmatpush1.msra.mxu0 0.0
        %304 = vmatprep.subr.mxu0 0.0
        %305 = vmatpush1.msra.mxu0 0.0
        %306 = vmatprep.subr.mxu0 0.0
        %307 = vmatpush1.msra.mxu0 0.0
        %308 = vmatprep.subr.mxu0 0.0
        %309 = vmatpush1.msra.mxu0 0.0
        %310 = vmatprep.subr.mxu0 0.0
        %311 = vmatpush1.msra.mxu0 0.0
        %312 = vmatprep.subr.mxu0 0.0
        %313 = vmatpush1.msra.mxu0 0.0
        %314 = vmatprep.subr.mxu0 0.0
        %315 = vmatpush1.msra.mxu0 0.0
        %316 = vmatprep.subr.mxu0 0.0
        %317 = vmatpush1.msra.mxu0 0.0
        %318 = vmatprep.subr.mxu0 0.0
        %319 = vmatpush1.msra.mxu0 0.0
        %320 = vmatprep.subr.mxu0 0.0
        %321 = vmatpush1.msra.mxu0 0.0
        %322 = vmatprep.subr.mxu0 0.0
        %323 = vmatpush1.msra.mxu0 0.0
        %324 = vmatprep.subr.mxu0 0.0
        %325 = vmatpush1.msra.mxu0 0.0
        %326 = vmatprep.subr.mxu0 0.0
        %327 = vmatpush1.msra.mxu0 0.0
        %328 = vmatprep.mubr.f32.mxu0 0.0
        %329 = vmatmul.mubr.f32.gmra.mrb[0].mxu0 %v262
        %v330 = vpop.f32.mrb[0].mxu0
        %v331 = vadd.f32 %v255, %v330
        %v332 = vpop.f32.mrb[0].mxu0
        %333 = vdwg.mxu0
        %v334 = vld [vmem:[%s2] sm:$0x1]
        %v336 = vlaneseq
        %v337 = vshrl.u32 %v336, 7
        %v338 = vsub.s32 0, %v337
        %v339 = vrot.slane %v334, %v338
        %v341 = vadd.f32 %v331, %v339
        %v342 = vld [vmem:[%s3] sm:$0x1]
        %v343 = vld [vmem:[%s4] sm:$0x1]
        %v344 = vsel %vm260, %v341, 0.0
        %345 = vadd.xlane.f32.xlu0 %v344
        %v346 = vpop.xlane.xlu0 %345
        %v347 = vrcp.pop 32.0
        %v348 = vmul.f32 %v346, %v347
        %v349 = vsub.f32 %v341, %v348
        %v350 = vmul.f32 %v349, %v349
        %v351 = vsel %vm260, %v350, 0.0
        %352 = vadd.xlane.f32.xlu0 %v351
        %v353 = vpop.xlane.xlu0 %352
        %v354 = vmul.f32 %v353, 0.032258064
        %v355 = vrsqrt.pop %v354
        %v356 = vmul.f32 %v354, %v355
        %vm357 = vcmp.eq.f32.partialorder %v354, inf
        %v358 = vsel %vm357, %v354, %v356
        %vm359 = vcmp.eq.f32.partialorder %v354, 0.0
        %v360 = vand.u32 %v354, 2147483648
        %v361 = vsel %vm359, %v360, %v358
        %v362 = vadd.f32 %v361, 1e-06
        %v363 = vrcp.pop %v362
        %v364 = vmul.f32 1.0, %v363
        %v365 = vmul.f32 %v349, %v364
        %v367 = vlaneseq
        %v368 = vshrl.u32 %v367, 7
        %v369 = vsub.s32 0, %v368
        %v370 = vrot.slane %v342, %v369
        %v372 = vmul.f32 %v365, %v370
        %v374 = vlaneseq
        %v375 = vshrl.u32 %v374, 7
        %v376 = vsub.s32 0, %v375
        %v377 = vrot.slane %v343, %v376
        %v379 = vadd.f32 %v372, %v377
        %380 = vst.msk [vmem:[%s254] sm:$0xff] %vm260, %v379
        %s381 = sand.u32 %s141, 1
        %s382 = scalar_lea.sflag [#allocation4], %s381
        %s383 = sand.u32 %s141, 1
        %s384 = smul.addr %s383, 8
        %s385 = scalar_lea.vmem [#allocation7], %s384
        // Predicated region
        $region49: #{tpu_custom_call.1} parent=39 // pred_check
          %p386 = pneg %p151
        $region50: #{tpu_custom_call.1} parent=39 // pred_check_branch
          %388 = sbr.rel (%p386) target = $region52
        $region51: #{tpu_custom_call.1} parent=39 // pred_region
          %s390 = ssub.s32 128, 128
          %391 = vsyncadd %s382, %s390
          %s392 = smul.addr %s23, 128
          %s393 = scalar_lea.hbm %s5, %s392
          %s395 = sshll.u32 %s385, 4
          %s396 = int_to_ptr.vmem [resolvable:$true] %s395
          %398 = dma.vmem_to_hbm [thread:$0]  %s396, 128, %s393, %s382
        $region52: #{tpu_custom_call.1} parent=39 // pred_fallthru
          _
      $region40: #{tpu_custom_call.1} parent=5 // pred_fallthru
        _
      %p399 = scmp.le.s32.totalorder 2, %s18
      // Predicated region
      $region53: #{tpu_custom_call.1} parent=5 // pred_check
        %p400 = pneg %p399
      $region54: #{tpu_custom_call.1} parent=5 // pred_check_branch
        %402 = sbr.rel (%p400) target = $region56
      $region55: #{tpu_custom_call.1} parent=5 // pred_region
        %s403 = ssub.s32 %s18, 2
        // Predicated region
        $region57: #{tpu_custom_call.1} parent=55 // pred_check
          %p404 = pneg %p157
        $region58: #{tpu_custom_call.1} parent=55 // pred_check_branch
          %406 = sbr.rel (%p404) target = $region60
        $region59: #{tpu_custom_call.1} parent=55 // pred_region
          %s407 = sand.u32 %s142, 1
          %s408 = scalar_lea.sflag [#allocation4], %s407
          %s409 = sand.u32 %s142, 1
          %s410 = smul.addr %s409, 8
          %s411 = scalar_lea.vmem [#allocation7], %s410
          %412 = dma.done %s408, 128
        $region60: #{tpu_custom_call.1} parent=55 // pred_fallthru
          _
      $region56: #{tpu_custom_call.1} parent=5 // pred_fallthru
        _
    $region6: #{tpu_custom_call.1} parent=1 // loop_footer
      %s22 = sadd.s32 1, %s18
    $region7: #{tpu_custom_call.1} parent=1 // loop_footer_branch
      %17 = sbr.rel target = $region3
    $region8: #{tpu_custom_call.1} parent=1 // loop_exit
      _
    %413 = vsyncpa [#allocation3], 1
    %s414 = scalar_lea.sflag [#allocation3], 1
    %415 = vsyncpa %s414, 1
    %416 = vsyncpa [#allocation6], 1
    %417 = vsyncpa [#allocation4], 1
    %s418 = scalar_lea.sflag [#allocation4], 1
    %419 = vsyncpa %s418, 1

</llo_original>
